<compile_context>
chip_gen: v7x
topology: tpu7x:2x2x1
jax: 0.10.0
libtpu: 0.0.40
codegen_flags: <defaults>
</compile_context>

<pallas_src>
import functools
import math

import jax
import jax.numpy as jnp
from jax.experimental import pallas as pl
from jax.experimental.pallas import tpu as pltpu


# --------------------------------------------------------------------------- helpers


def _pick_tile(full, target, align):
    """Largest `align`-multiple tile <= target that evenly divides `full`,
    else the full extent (keeps the (8,128) block rule satisfied)."""
    if full <= target:
        return full
    t = (target // align) * align
    while t >= align:
        if full % t == 0:
            return t
        t -= align
    return full


# --------------------------------------------------------------------------- fused FFN kernel (weights resident in VMEM)


def _ffn_fused_kernel(x_ref, w1_ref, b1_ref, w2_ref, b2_ref, o_ref):
    """One (tm, dim) output tile: y = gelu(x @ W1 + b1) @ W2 + b2."""
    h = jnp.dot(x_ref[...], w1_ref[...], preferred_element_type=jnp.float32)
    h = h + b1_ref[...].astype(jnp.float32)
    # TODO(synk): torch nn.GELU default is the exact erf form; the tanh
    # approximation is used here for guaranteed TPU (EUP) lowering.
    h = jax.nn.gelu(h, approximate=True)
    y = jnp.dot(h.astype(w2_ref.dtype), w2_ref[...],
                preferred_element_type=jnp.float32)
    y = y + b2_ref[...].astype(jnp.float32)
    o_ref[...] = y.astype(o_ref.dtype)


def _fused_vmem_bytes(tm, dim, hidden, in_isz, out_isz):
    """Conservative VMEM estimate: double-buffered x/out tiles, weights
    counted twice (pipeline buffers), f32 hidden intermediate + cast copy."""
    x_b = 2 * tm * dim * in_isz
    o_b = 2 * tm * dim * out_isz
    w_b = 2 * (dim * hidden + hidden * dim + hidden + dim) * in_isz
    h_b = tm * hidden * (4 + in_isz)
    return x_b + o_b + w_b + h_b


def ffn_fused(x2, w1, b1, w2, b2, *, tm, out_dtype=None):
    """Whole FFN in one pipelined kernel, grid over row tiles only."""
    M, D = x2.shape
    Dh = w1.shape[1]
    out_dtype = x2.dtype if out_dtype is None else out_dtype

    grid = (M // tm,)
    in_isz = jnp.dtype(x2.dtype).itemsize
    cost = pl.CostEstimate(
        flops=4 * M * D * Dh,
        transcendentals=M * Dh,
        bytes_accessed=(M * D + 2 * D * Dh + D + Dh) * in_isz
        + M * D * jnp.dtype(out_dtype).itemsize,
    )

    return pl.pallas_call(
        _ffn_fused_kernel,
        out_shape=jax.ShapeDtypeStruct((M, D), out_dtype),
        grid_spec=pltpu.PrefetchScalarGridSpec(
            num_scalar_prefetch=0,
            grid=grid,
            in_specs=[
                pl.BlockSpec((tm, D), lambda i: (i, 0)),    # x row tile
                pl.BlockSpec((D, Dh), lambda i: (0, 0)),    # W1 (resident)
                pl.BlockSpec((1, Dh), lambda i: (0, 0)),    # b1
                pl.BlockSpec((Dh, D), lambda i: (0, 0)),    # W2 (resident)
                pl.BlockSpec((1, D), lambda i: (0, 0)),     # b2
            ],
            out_specs=pl.BlockSpec((tm, D), lambda i: (i, 0)),
        ),
        compiler_params=pltpu.CompilerParams(
            dimension_semantics=("parallel",),
            vmem_limit_bytes=48 * 1024 * 1024,
        ),
        cost_estimate=cost,
    )(x2, w1, b1, w2, b2)


# --------------------------------------------------------------------------- fallback: tiled linear (+ optional GELU) kernel


def _linear_kernel(x_ref, w_ref, b_ref, o_ref, acc_ref, *, activation):
    """One (tm, tn) output tile; K is the innermost ('arbitrary') grid axis."""
    k = pl.program_id(2)

    @pl.when(k == 0)
    def _():
        acc_ref[...] = jnp.zeros_like(acc_ref)

    acc_ref[...] += jnp.dot(
        x_ref[...], w_ref[...], preferred_element_type=jnp.float32
    )

    @pl.when(k == pl.num_programs(2) - 1)
    def _():
        out = acc_ref[...] + b_ref[...].astype(jnp.float32)  # bias fused
        if activation == "gelu":
            # TODO(synk): exact-erf GELU replaced by tanh approximation.
            out = jax.nn.gelu(out, approximate=True)
        o_ref[...] = out.astype(o_ref.dtype)


def fused_linear(x, w, b, *, activation=None, tm=256, tn=256, tk=512,
                 out_dtype=None):
    """y = act(x @ w + b)   x:(M,K)  w:(K,N)  b:(1,N)  ->  (M,N)"""
    M, K = x.shape
    Kw, N = w.shape
    assert K == Kw and b.shape == (1, N)
    out_dtype = x.dtype if out_dtype is None else out_dtype

    tm = _pick_tile(M, tm, 8)
    tn = _pick_tile(N, tn, 128)
    tk = _pick_tile(K, tk, 128)
    grid = (M // tm, N // tn, K // tk)

    in_bytes = jnp.dtype(x.dtype).itemsize
    cost = pl.CostEstimate(
        flops=2 * M * N * K,
        transcendentals=(M * N) if activation == "gelu" else 0,
        bytes_accessed=(M * K + K * N + N) * in_bytes
        + M * N * jnp.dtype(out_dtype).itemsize,
    )

    return pl.pallas_call(
        functools.partial(_linear_kernel, activation=activation),
        out_shape=jax.ShapeDtypeStruct((M, N), out_dtype),
        grid_spec=pltpu.PrefetchScalarGridSpec(
            num_scalar_prefetch=0,
            grid=grid,
            in_specs=[
                pl.BlockSpec((tm, tk), lambda i, j, k: (i, k)),   # x tile
                pl.BlockSpec((tk, tn), lambda i, j, k: (k, j)),   # w tile
                pl.BlockSpec((1, tn), lambda i, j, k: (0, j)),    # bias tile
            ],
            out_specs=pl.BlockSpec((tm, tn), lambda i, j, k: (i, j)),
            scratch_shapes=[pltpu.VMEM((tm, tn), jnp.float32)],
        ),
        compiler_params=pltpu.CompilerParams(
            dimension_semantics=("parallel", "parallel", "arbitrary"),
            vmem_limit_bytes=48 * 1024 * 1024,
        ),
        cost_estimate=cost,
    )(x, w, b)


# --------------------------------------------------------------------------- dispatch


_FUSED_VMEM_BUDGET = 40 * 1024 * 1024  # conservative, fits v7x 64 MiB VMEM


def feedforward_forward(x2, w1, b1, w2, b2):
    """x2:(M, dim) -> (M, dim). Picks the fully-fused kernel when the weights
    (and a reasonable row tile) fit VMEM, else two tiled linear kernels."""
    M, D = x2.shape
    Dh = w1.shape[1]
    in_isz = jnp.dtype(x2.dtype).itemsize
    out_isz = in_isz

    for tm_target in (512, 256, 128, 64, 32, 16, 8):
        tm = _pick_tile(M, tm_target, 8)
        if _fused_vmem_bytes(tm, D, Dh, in_isz, out_isz) <= _FUSED_VMEM_BUDGET:
            return ffn_fused(x2, w1, b1, w2, b2, tm=tm)

    # Weights too large to keep resident: two pipelined, tiled projections.
    h = fused_linear(x2, w1, b1, activation="gelu")
    return fused_linear(h, w2, b2)


# --------------------------------------------------------------------------- module


class FeedForwardPallas:
    """Pallas equivalent of the PyTorch ViT `FeedForward` module (eval mode)."""

    def __init__(self, dim, hidden_dim, dropout=0.0, key=None, dtype=jnp.float32):
        self.dim = dim
        self.hidden_dim = hidden_dim

        key = jax.random.PRNGKey(42) if key is None else key
        k1, k2, k3, k4 = jax.random.split(key, 4)
        lim1 = 1.0 / math.sqrt(dim)
        lim2 = 1.0 / math.sqrt(hidden_dim)
        # PyTorch Linear stores (out, in); pre-transpose to (in, out) so y = x @ w + b.
        self.w1 = jax.random.uniform(k1, (dim, hidden_dim), dtype, -lim1, lim1)
        self.b1 = jax.random.uniform(k2, (1, hidden_dim), dtype, -lim1, lim1)
        self.w2 = jax.random.uniform(k3, (hidden_dim, dim), dtype, -lim2, lim2)
        self.b2 = jax.random.uniform(k4, (1, dim), dtype, -lim2, lim2)
        # TODO(synk): nn.Dropout(dropout) is identity at inference (dropout=0.0), omitted.

    def __call__(self, x):
        b, n, d = x.shape
        x2 = x.reshape(b * n, d)
        y = feedforward_forward(x2, self.w1, self.b1, self.w2, self.b2)
        return y.reshape(b, n, self.dim)


# --------------------------------------------------------------------------- reference


def feedforward_ref(x, mod: FeedForwardPallas):
    h = jax.nn.gelu(x @ mod.w1 + mod.b1, approximate=True)
    return h @ mod.w2 + mod.b2


# --------------------------------------------------------------------------- main

if __name__ == "__main__":
    # Small shapes consistent with the module: batch=2, seq=16, dim=32, hidden=128.
    batch, seq, dim, hidden = 2, 16, 32, 128

    key = jax.random.PRNGKey(0)
    x = jax.random.normal(key, (batch, seq, dim), jnp.float32)

    module = FeedForwardPallas(dim, hidden, key=jax.random.PRNGKey(1))

    y = module(x)
    y = jax.block_until_ready(y)

    y_ref = feedforward_ref(x, module)
    assert y.shape == (batch, seq, dim), y.shape
    assert jnp.allclose(y, y_ref, rtol=1e-3, atol=1e-3), "mismatch vs. JAX reference"

    print("KERNEL_OK")
</pallas_src>

<mosaic_0001>
module attributes {stable_mosaic.version = 11 : i64} {
  func.func @_ffn_fused_kernel(%arg0: i32, %arg1: memref<32x32xf32, #tpu.memory_space<vmem>>, %arg2: memref<32x128xf32, #tpu.memory_space<vmem>>, %arg3: memref<1x128xf32, #tpu.memory_space<vmem>>, %arg4: memref<128x32xf32, #tpu.memory_space<vmem>>, %arg5: memref<1x32xf32, #tpu.memory_space<vmem>>, %arg6: memref<32x32xf32, #tpu.memory_space<vmem>>) attributes {dimension_semantics = [#tpu.dimension_semantics<parallel>], iteration_bounds = array<i64: 1>, scalar_prefetch = 0 : i64, scratch_operands = 0 : i64, tpu.core_type = #tpu.core_type<tc>, window_params = [{transform_indices = @transform_0, window_bounds = array<i64: 32, 32>}, {pipeline_mode = #tpu.pipeline_mode<synchronous>, transform_indices = @transform_1, window_bounds = array<i64: 32, 128>}, {pipeline_mode = #tpu.pipeline_mode<synchronous>, transform_indices = @transform_2, window_bounds = array<i64: 1, 128>}, {pipeline_mode = #tpu.pipeline_mode<synchronous>, transform_indices = @transform_3, window_bounds = array<i64: 128, 32>}, {pipeline_mode = #tpu.pipeline_mode<synchronous>, transform_indices = @transform_4, window_bounds = array<i64: 1, 32>}, {transform_indices = @transform_5, window_bounds = array<i64: 32, 32>}]} {
    %c0 = arith.constant 0 : index
    %c0_0 = arith.constant 0 : index
    %0 = vector.load %arg1[%c0, %c0_0] : memref<32x32xf32, #tpu.memory_space<vmem>>, vector<32x32xf32>
    %c0_1 = arith.constant 0 : index
    %c0_2 = arith.constant 0 : index
    %1 = vector.load %arg2[%c0_1, %c0_2] : memref<32x128xf32, #tpu.memory_space<vmem>>, vector<32x128xf32>
    %cst = arith.constant dense<0.000000e+00> : vector<32x128xf32>
    %2 = tpu.matmul %0, %1, %cst {dimension_numbers = #tpu.dot_dimension_numbers<[1], [0], [0], [1], [0, 0, 1, 1], [], []>} : vector<32x32xf32>, vector<32x128xf32>, vector<32x128xf32> -> vector<32x128xf32>
    %c0_3 = arith.constant 0 : index
    %c0_4 = arith.constant 0 : index
    %3 = vector.load %arg3[%c0_3, %c0_4] : memref<1x128xf32, #tpu.memory_space<vmem>>, vector<1x128xf32>
    %4 = vector.broadcast %3 : vector<1x128xf32> to vector<32x128xf32>
    %5 = arith.addf %2, %4 : vector<32x128xf32>
    %6 = arith.mulf %5, %5 : vector<32x128xf32>
    %7 = arith.mulf %5, %6 : vector<32x128xf32>
    %cst_5 = arith.constant 4.471500e-02 : f32
    %8 = vector.broadcast %cst_5 : f32 to vector<32x128xf32>
    %9 = arith.mulf %8, %7 : vector<32x128xf32>
    %10 = arith.addf %5, %9 : vector<32x128xf32>
    %cst_6 = arith.constant 0.797884583 : f32
    %11 = vector.broadcast %cst_6 : f32 to vector<32x128xf32>
    %12 = arith.mulf %11, %10 : vector<32x128xf32>
    %13 = math.tanh %12 : vector<32x128xf32>
    %cst_7 = arith.constant 1.000000e+00 : f32
    %14 = vector.broadcast %cst_7 : f32 to vector<32x128xf32>
    %15 = arith.addf %14, %13 : vector<32x128xf32>
    %cst_8 = arith.constant 5.000000e-01 : f32
    %16 = vector.broadcast %cst_8 : f32 to vector<32x128xf32>
    %17 = arith.mulf %16, %15 : vector<32x128xf32>
    %18 = arith.mulf %5, %17 : vector<32x128xf32>
    %c0_9 = arith.constant 0 : index
    %c0_10 = arith.constant 0 : index
    %19 = vector.load %arg4[%c0_9, %c0_10] : memref<128x32xf32, #tpu.memory_space<vmem>>, vector<128x32xf32>
    %cst_11 = arith.constant dense<0.000000e+00> : vector<32x32xf32>
    %20 = tpu.matmul %18, %19, %cst_11 {dimension_numbers = #tpu.dot_dimension_numbers<[1], [0], [0], [1], [0, 0, 1, 1], [], []>} : vector<32x128xf32>, vector<128x32xf32>, vector<32x32xf32> -> vector<32x32xf32>
    %c0_12 = arith.constant 0 : index
    %c0_13 = arith.constant 0 : index
    %21 = vector.load %arg5[%c0_12, %c0_13] : memref<1x32xf32, #tpu.memory_space<vmem>>, vector<1x32xf32>
    %22 = vector.broadcast %21 : vector<1x32xf32> to vector<32x32xf32>
    %23 = arith.addf %20, %22 : vector<32x32xf32>
    %c0_14 = arith.constant 0 : index
    %c0_15 = arith.constant 0 : index
    %24 = vector.load %arg6[%c0_14, %c0_15] : memref<32x32xf32, #tpu.memory_space<vmem>>, vector<32x32xf32>
    tpu.vector_store %arg6[%c0_14, %c0_15], %23 {strides = array<i32>} : memref<32x32xf32, #tpu.memory_space<vmem>>, vector<32x32xf32>,
    return
  }
  func.func @transform_0(%arg0: i32) -> (i32, i32) {
    %c0_i32 = arith.constant 0 : i32
    %c0_i32_0 = arith.constant 0 : i32
    return %arg0, %c0_i32 : i32, i32
  }
  func.func @transform_1(%arg0: i32) -> (i32, i32) {
    %c0_i32 = arith.constant 0 : i32
    %c0_i32_0 = arith.constant 0 : i32
    %c0_i32_1 = arith.constant 0 : i32
    return %c0_i32, %c0_i32_0 : i32, i32
  }
  func.func @transform_2(%arg0: i32) -> (i32, i32) {
    %c0_i32 = arith.constant 0 : i32
    %c0_i32_0 = arith.constant 0 : i32
    %c0_i32_1 = arith.constant 0 : i32
    return %c0_i32, %c0_i32_0 : i32, i32
  }
  func.func @transform_3(%arg0: i32) -> (i32, i32) {
    %c0_i32 = arith.constant 0 : i32
    %c0_i32_0 = arith.constant 0 : i32
    %c0_i32_1 = arith.constant 0 : i32
    return %c0_i32, %c0_i32_0 : i32, i32
  }
  func.func @transform_4(%arg0: i32) -> (i32, i32) {
    %c0_i32 = arith.constant 0 : i32
    %c0_i32_0 = arith.constant 0 : i32
    %c0_i32_1 = arith.constant 0 : i32
    return %c0_i32, %c0_i32_0 : i32, i32
  }
  func.func @transform_5(%arg0: i32) -> (i32, i32) {
    %c0_i32 = arith.constant 0 : i32
    %c0_i32_0 = arith.constant 0 : i32
    return %arg0, %c0_i32 : i32, i32
  }
}

</mosaic_0001>

<llo_original>
// kernel: tpu_custom_call.1
$region0: #{tpu_custom_call.1}
  #allocation0 [shape = 'u32[]', space=smem, size = 0x4, offset = 0x4, fixed_abs, tag = 'smem constant byte address 0x4 - core index']
  #allocation1 [shape = 'u32[144,128]{1,0:T(1,128)}', space=vmem, size = 0x12000, scoped, tag = 'internal scratch']
  %s0 = inlined_call_operand.vmem [shape: f32[32,32], index: 0, kind: input, shape index: {}]
  %s1 = inlined_call_operand.vmem [shape: f32[32,128], index: 1, kind: input, shape index: {}]
  %s2 = inlined_call_operand.vmem [shape: f32[1,128], index: 2, kind: input, shape index: {}]
  %s3 = inlined_call_operand.vmem [shape: f32[128,32], index: 3, kind: input, shape index: {}]
  %s4 = inlined_call_operand.vmem [shape: f32[1,32], index: 4, kind: input, shape index: {}]
  %s5 = inlined_call_operand.hbm [shape: f32[32,32], index: 5, kind: output, shape index: {}]
  %s6 = sld [smem:[#allocation0]]
  $region30: #{tpu_custom_call.1} parent=0
    _
  %s8 = ssub.s32 1, %s6
  %s9 = scalar_select 0, %s8, %s6
  $region1: #{tpu_custom_call.1} parent=0
    #allocation2 [shape = 'u8[16384]{0}', space=vmem, size = 0x4000, scoped, tag = 'output window, operand 0, single buffered']
    #allocation3 [shape = 's32[1]{0}', space=sflag, size = 0x4, scoped, tag = 'scoped memory for tpu_custom_call.1']
    %10 = vsyncpa [#allocation3], 0
    // Predicated region
    $region2: #{tpu_custom_call.1} parent=1 // pred_check
      _
    $region3: #{tpu_custom_call.1} parent=1 // pred_check_branch
      %12 = sbr.rel (0) target = $region5
    $region4: #{tpu_custom_call.1} parent=1 // pred_region
      _
    $region5: #{tpu_custom_call.1} parent=1 // pred_fallthru
      _
    // Predicated region
    $region6: #{tpu_custom_call.1} parent=1 // pred_check
      _
    $region7: #{tpu_custom_call.1} parent=1 // pred_check_branch
      %14 = sbr.rel (0) target = $region9
    $region8: #{tpu_custom_call.1} parent=1 // pred_region
      _
    $region9: #{tpu_custom_call.1} parent=1 // pred_fallthru
      _
    // Predicated region
    $region10: #{tpu_custom_call.1} parent=1 // pred_check
      _
    $region11: #{tpu_custom_call.1} parent=1 // pred_check_branch
      %16 = sbr.rel (0) target = $region13
    $region12: #{tpu_custom_call.1} parent=1 // pred_region
      _
    $region13: #{tpu_custom_call.1} parent=1 // pred_fallthru
      _
    // Predicated region
    $region14: #{tpu_custom_call.1} parent=1 // pred_check
      _
    $region15: #{tpu_custom_call.1} parent=1 // pred_check_branch
      %18 = sbr.rel (0) target = $region17
    $region16: #{tpu_custom_call.1} parent=1 // pred_region
      _
    $region17: #{tpu_custom_call.1} parent=1 // pred_fallthru
      _
    // Predicated region
    $region18: #{tpu_custom_call.1} parent=1 // pred_check
      _
    $region19: #{tpu_custom_call.1} parent=1 // pred_check_branch
      %20 = sbr.rel (0) target = $region21
    $region20: #{tpu_custom_call.1} parent=1 // pred_region
      _
    $region21: #{tpu_custom_call.1} parent=1 // pred_fallthru
      _
    %v21 = vld [vmem:[%s0] sm:$0xff]
    %v22 = vld [vmem:[%s0 + $0x8] sm:$0xff]
    %v23 = vld [vmem:[%s0 + $0x10] sm:$0xff]
    %v24 = vld [vmem:[%s0 + $0x18] sm:$0xff]
    %v25 = vld [vmem:[%s1] sm:$0xff]
    %v26 = vld [vmem:[%s1 + $0x8] sm:$0xff]
    %v27 = vld [vmem:[%s1 + $0x10] sm:$0xff]
    %v28 = vld [vmem:[%s1 + $0x18] sm:$0xff]
    %v29 = vld [vmem:[%s2] sm:$0x1]
    %v31 = vlaneseq
    %v32 = vshrl.u32 %v31, 7
    %v33 = vsub.s32 0, %v32
    %v34 = vrot.slane %v29, %v33
    %vm36 = vcmask 261120
    %v38 = vsel %vm36, %v21, 0
    %v41 = vsel %vm36, %v22, 0
    %v44 = vsel %vm36, %v23, 0
    %v47 = vsel %vm36, %v24, 0
    %49 = vmatprep.subr.mxu0 0.0
    %50 = vmatpush1.msra.mxu0 %v25
    %51 = vmatprep.subr.mxu0 0.0
    %52 = vmatpush1.msra.mxu0 %v26
    %53 = vmatprep.subr.mxu0 0.0
    %54 = vmatpush1.msra.mxu0 %v27
    %55 = vmatprep.subr.mxu0 0.0
    %56 = vmatpush1.msra.mxu0 %v28
    %57 = vmatprep.subr.mxu0 0.0
    %58 = vmatpush1.msra.mxu0 0.0
    %59 = vmatprep.subr.mxu0 0.0
    %60 = vmatpush1.msra.mxu0 0.0
    %61 = vmatprep.subr.mxu0 0.0
    %62 = vmatpush1.msra.mxu0 0.0
    %63 = vmatprep.subr.mxu0 0.0
    %64 = vmatpush1.msra.mxu0 0.0
    %65 = vmatprep.subr.mxu0 0.0
    %66 = vmatpush1.msra.mxu0 0.0
    %67 = vmatprep.subr.mxu0 0.0
    %68 = vmatpush1.msra.mxu0 0.0
    %69 = vmatprep.subr.mxu0 0.0
    %70 = vmatpush1.msra.mxu0 0.0
    %71 = vmatprep.subr.mxu0 0.0
    %72 = vmatpush1.msra.mxu0 0.0
    %73 = vmatprep.subr.mxu0 0.0
    %74 = vmatpush1.msra.mxu0 0.0
    %75 = vmatprep.subr.mxu0 0.0
    %76 = vmatpush1.msra.mxu0 0.0
    %77 = vmatprep.subr.mxu0 0.0
    %78 = vmatpush1.msra.mxu0 0.0
    %79 = vmatprep.subr.mxu0 0.0
    %80 = vmatpush1.msra.mxu0 0.0
    %81 = vmatprep.subr.mxu0 0.0
    %82 = vmatpush1.msra.mxu0 0.0
    %83 = vmatprep.subr.mxu0 0.0
    %84 = vmatpush1.msra.mxu0 0.0
    %85 = vmatprep.subr.mxu0 0.0
    %86 = vmatpush1.msra.mxu0 0.0
    %87 = vmatprep.subr.mxu0 0.0
    %88 = vmatpush1.msra.mxu0 0.0
    %89 = vmatprep.subr.mxu0 0.0
    %90 = vmatpush1.msra.mxu0 0.0
    %91 = vmatprep.subr.mxu0 0.0
    %92 = vmatpush1.msra.mxu0 0.0
    %93 = vmatprep.subr.mxu0 0.0
    %94 = vmatpush1.msra.mxu0 0.0
    %95 = vmatprep.subr.mxu0 0.0
    %96 = vmatpush1.msra.mxu0 0.0
    %97 = vmatprep.subr.mxu0 0.0
    %98 = vmatpush1.msra.mxu0 0.0
    %99 = vmatprep.subr.mxu0 0.0
    %100 = vmatpush1.msra.mxu0 0.0
    %101 = vmatprep.subr.mxu0 0.0
    %102 = vmatpush1.msra.mxu0 0.0
    %103 = vmatprep.subr.mxu0 0.0
    %104 = vmatpush1.msra.mxu0 0.0
    %105 = vmatprep.subr.mxu0 0.0
    %106 = vmatpush1.msra.mxu0 0.0
    %107 = vmatprep.subr.mxu0 0.0
    %108 = vmatpush1.msra.mxu0 0.0
    %109 = vmatprep.subr.mxu0 0.0
    %110 = vmatpush1.msra.mxu0 0.0
    %111 = vmatprep.subr.mxu0 0.0
    %112 = vmatpush1.msra.mxu0 0.0
    %113 = vmatprep.mubr.f32.mxu0 0.0
    %114 = vmatmul.mubr.f32.gmra.mrb[0].mxu0 %v38
    %v115 = vpop.f32.mrb[0].mxu0
    %v116 = vadd.f32 %v34, %v115
    %v117 = vpop.f32.mrb[0].mxu0
    %118 = vmatprep.mubr.f32.mxu0 0.0
    %119 = vmatmul.mubr.f32.gmra.mrb[0].mxu0 %v41
    %v120 = vpop.f32.mrb[0].mxu0
    %v121 = vadd.f32 %v34, %v120
    %v122 = vpop.f32.mrb[0].mxu0
    %123 = vmatprep.mubr.f32.mxu0 0.0
    %124 = vmatmul.mubr.f32.gmra.mrb[0].mxu0 %v44
    %v125 = vpop.f32.mrb[0].mxu0
    %v126 = vadd.f32 %v34, %v125
    %v127 = vpop.f32.mrb[0].mxu0
    %128 = vmatprep.mubr.f32.mxu0 0.0
    %129 = vmatmul.mubr.f32.gmra.mrb[0].mxu0 %v47
    %v130 = vpop.f32.mrb[0].mxu0
    %v131 = vadd.f32 %v34, %v130
    %v132 = vpop.f32.mrb[0].mxu0
    %133 = vdwg.mxu0
    %v134 = vmul.f32 %v116, %v116
    %v135 = vmul.f32 %v121, %v121
    %v136 = vmul.f32 %v126, %v126
    %v137 = vmul.f32 %v131, %v131
    %v138 = vmul.f32 %v116, %v134
    %v139 = vmul.f32 %v121, %v135
    %v140 = vmul.f32 %v126, %v136
    %v141 = vmul.f32 %v131, %v137
    %v142 = vmul.f32 %v138, 0.044715
    %v143 = vmul.f32 %v139, 0.044715
    %v144 = vmul.f32 %v140, 0.044715
    %v145 = vmul.f32 %v141, 0.044715
    %v146 = vadd.f32 %v116, %v142
    %v147 = vadd.f32 %v121, %v143
    %v148 = vadd.f32 %v126, %v144
    %v149 = vadd.f32 %v131, %v145
    %v150 = vmul.f32 %v146, 0.7978846
    %v151 = vmul.f32 %v147, 0.7978846
    %v152 = vmul.f32 %v148, 0.7978846
    %v153 = vmul.f32 %v149, 0.7978846
    %v154 = vtanh.pop %v150
    %v155 = vtanh.pop %v151
    %v156 = vtanh.pop %v152
    %v157 = vtanh.pop %v153
    %v158 = vadd.f32 %v154, 1.0
    %v159 = vadd.f32 %v155, 1.0
    %v160 = vadd.f32 %v156, 1.0
    %v161 = vadd.f32 %v157, 1.0
    %v162 = vmul.f32 %v158, 0.5
    %v163 = vmul.f32 %v159, 0.5
    %v164 = vmul.f32 %v160, 0.5
    %v165 = vmul.f32 %v161, 0.5
    %v166 = vmul.f32 %v116, %v162
    %v167 = vmul.f32 %v121, %v163
    %v168 = vmul.f32 %v126, %v164
    %v169 = vmul.f32 %v131, %v165
    %v170 = vld [vmem:[%s3] sm:$0xff]
    %v171 = vld [vmem:[%s3 + $0x8] sm:$0xff]
    %v172 = vld [vmem:[%s3 + $0x10] sm:$0xff]
    %v173 = vld [vmem:[%s3 + $0x18] sm:$0xff]
    %v174 = vld [vmem:[%s3 + $0x20] sm:$0xff]
    %v175 = vld [vmem:[%s3 + $0x28] sm:$0xff]
    %v176 = vld [vmem:[%s3 + $0x30] sm:$0xff]
    %v177 = vld [vmem:[%s3 + $0x38] sm:$0xff]
    %v178 = vld [vmem:[%s3 + $0x40] sm:$0xff]
    %v179 = vld [vmem:[%s3 + $0x48] sm:$0xff]
    %v180 = vld [vmem:[%s3 + $0x50] sm:$0xff]
    %v181 = vld [vmem:[%s3 + $0x58] sm:$0xff]
    %v182 = vld [vmem:[%s3 + $0x60] sm:$0xff]
    %v183 = vld [vmem:[%s3 + $0x68] sm:$0xff]
    %v184 = vld [vmem:[%s3 + $0x70] sm:$0xff]
    %v185 = vld [vmem:[%s3 + $0x78] sm:$0xff]
    %v186 = vld [vmem:[%s4] sm:$0x1]
    %v188 = vlaneseq
    %v189 = vshrl.u32 %v188, 7
    %v190 = vsub.s32 0, %v189
    %v191 = vrot.slane %v186, %v190
    %193 = vmatprep.subr.mxu0 0.0
    %194 = vmatpush1.msra.mxu0 %v170
    %195 = vmatprep.subr.mxu0 0.0
    %196 = vmatpush1.msra.mxu0 %v171
    %197 = vmatprep.subr.mxu0 0.0
    %198 = vmatpush1.msra.mxu0 %v172
    %199 = vmatprep.subr.mxu0 0.0
    %200 = vmatpush1.msra.mxu0 %v173
    %201 = vmatprep.subr.mxu0 0.0
    %202 = vmatpush1.msra.mxu0 %v174
    %203 = vmatprep.subr.mxu0 0.0
    %204 = vmatpush1.msra.mxu0 %v175
    %205 = vmatprep.subr.mxu0 0.0
    %206 = vmatpush1.msra.mxu0 %v176
    %207 = vmatprep.subr.mxu0 0.0
    %208 = vmatpush1.msra.mxu0 %v177
    %209 = vmatprep.subr.mxu0 0.0
    %210 = vmatpush1.msra.mxu0 %v178
    %211 = vmatprep.subr.mxu0 0.0
    %212 = vmatpush1.msra.mxu0 %v179
    %213 = vmatprep.subr.mxu0 0.0
    %214 = vmatpush1.msra.mxu0 %v180
    %215 = vmatprep.subr.mxu0 0.0
    %216 = vmatpush1.msra.mxu0 %v181
    %217 = vmatprep.subr.mxu0 0.0
    %218 = vmatpush1.msra.mxu0 %v182
    %219 = vmatprep.subr.mxu0 0.0
    %220 = vmatpush1.msra.mxu0 %v183
    %221 = vmatprep.subr.mxu0 0.0
    %222 = vmatpush1.msra.mxu0 %v184
    %223 = vmatprep.subr.mxu0 0.0
    %224 = vmatpush1.msra.mxu0 %v185
    %225 = vmatprep.subr.mxu0 0.0
    %226 = vmatpush1.msra.mxu0 0.0
    %227 = vmatprep.subr.mxu0 0.0
    %228 = vmatpush1.msra.mxu0 0.0
    %229 = vmatprep.subr.mxu0 0.0
    %230 = vmatpush1.msra.mxu0 0.0
    %231 = vmatprep.subr.mxu0 0.0
    %232 = vmatpush1.msra.mxu0 0.0
    %233 = vmatprep.subr.mxu0 0.0
    %234 = vmatpush1.msra.mxu0 0.0
    %235 = vmatprep.subr.mxu0 0.0
    %236 = vmatpush1.msra.mxu0 0.0
    %237 = vmatprep.subr.mxu0 0.0
    %238 = vmatpush1.msra.mxu0 0.0
    %239 = vmatprep.subr.mxu0 0.0
    %240 = vmatpush1.msra.mxu0 0.0
    %241 = vmatprep.subr.mxu0 0.0
    %242 = vmatpush1.msra.mxu0 0.0
    %243 = vmatprep.subr.mxu0 0.0
    %244 = vmatpush1.msra.mxu0 0.0
    %245 = vmatprep.subr.mxu0 0.0
    %246 = vmatpush1.msra.mxu0 0.0
    %247 = vmatprep.subr.mxu0 0.0
    %248 = vmatpush1.msra.mxu0 0.0
    %249 = vmatprep.subr.mxu0 0.0
    %250 = vmatpush1.msra.mxu0 0.0
    %251 = vmatprep.subr.mxu0 0.0
    %252 = vmatpush1.msra.mxu0 0.0
    %253 = vmatprep.subr.mxu0 0.0
    %254 = vmatpush1.msra.mxu0 0.0
    %255 = vmatprep.subr.mxu0 0.0
    %256 = vmatpush1.msra.mxu0 0.0
    %257 = vmatprep.mubr.f32.mxu0 0.0
    %258 = vmatmul.mubr.f32.gmra.mrb[0].mxu0 %v166
    %v259 = vpop.f32.mrb[0].mxu0
    %v260 = vadd.f32 %v191, %v259
    %v261 = vpop.f32.mrb[0].mxu0
    %262 = vmatprep.mubr.f32.mxu0 0.0
    %263 = vmatmul.mubr.f32.gmra.mrb[0].mxu0 %v167
    %v264 = vpop.f32.mrb[0].mxu0
    %v265 = vadd.f32 %v191, %v264
    %v266 = vpop.f32.mrb[0].mxu0
    %267 = vmatprep.mubr.f32.mxu0 0.0
    %268 = vmatmul.mubr.f32.gmra.mrb[0].mxu0 %v168
    %v269 = vpop.f32.mrb[0].mxu0
    %v270 = vadd.f32 %v191, %v269
    %v271 = vpop.f32.mrb[0].mxu0
    %272 = vmatprep.mubr.f32.mxu0 0.0
    %273 = vmatmul.mubr.f32.gmra.mrb[0].mxu0 %v169
    %v274 = vpop.f32.mrb[0].mxu0
    %v275 = vadd.f32 %v191, %v274
    %v276 = vpop.f32.mrb[0].mxu0
    %277 = vdwg.mxu0
    %278 = vst.msk [vmem:[#allocation2] sm:$0xff] %vm36, %v260
    %279 = vst.msk [vmem:[#allocation2 + $0x8] sm:$0xff] %vm36, %v265
    %280 = vst.msk [vmem:[#allocation2 + $0x10] sm:$0xff] %vm36, %v270
    %281 = vst.msk [vmem:[#allocation2 + $0x18] sm:$0xff] %vm36, %v275
    // Predicated region
    $region22: #{tpu_custom_call.1} parent=1 // pred_check
      _
    $region23: #{tpu_custom_call.1} parent=1 // pred_check_branch
      %283 = sbr.rel (0) target = $region25
    $region24: #{tpu_custom_call.1} parent=1 // pred_region
      %s285 = ssub.s32 512, 512
      %286 = vsyncadd [#allocation3], %s285
      %s287 = sshll.u32 [#allocation2], 4
      %s288 = int_to_ptr.vmem [resolvable:$true] %s287
      %293 = dma.vmem_to_hbm [thread:$0]  %s288, 512, %s5, [#allocation3], 128, 128, 8
    $region25: #{tpu_custom_call.1} parent=1 // pred_fallthru
      _
    // Predicated region
    $region26: #{tpu_custom_call.1} parent=1 // pred_check
      _
    $region27: #{tpu_custom_call.1} parent=1 // pred_check_branch
      %295 = sbr.rel (0) target = $region29
    $region28: #{tpu_custom_call.1} parent=1 // pred_region
      %296 = dma.done [#allocation3], 512
    $region29: #{tpu_custom_call.1} parent=1 // pred_fallthru
      _
    %297 = vsyncpa [#allocation3], 1

</llo_original>
